<compile_context>
chip_gen: v7x
topology: tpu7x:2x2x1
jax: 0.10.0
libtpu: 0.0.40
codegen_flags: <defaults>
</compile_context>

<pallas_src>
import functools

import jax
import jax.numpy as jnp
from jax import lax
from jax.experimental import pallas as pl
from jax.experimental.pallas import tpu as pltpu

EPS = 1e-6


# ----------------------------------------------------------------------------
# Kernels
# ----------------------------------------------------------------------------
def _agn_select_kernel(attr_ref, x_ref, mus_ref, inv_ref, out_ref, *, num_groups):
    """Small-G path: G-way compare+select chain (VALU), hidden under HBM latency.

    attr_ref: (TN, 1) int32; x_ref/out_ref: (TN, D) native dtype;
    mus_ref/inv_ref: (G, D) f32 (inv = 1/(sigma+eps), precomputed in wrapper).
    """
    x = x_ref[...].astype(jnp.float32)          # upcast in-register only
    attr = attr_ref[...]                        # (TN, 1)
    mus = mus_ref[...]                          # (G, D)
    invs = inv_ref[...]                         # (G, D)

    # Start from group 0's (1, D) rows; implicit broadcasting keeps them as
    # sublane-broadcast vregs until a row-varying select forces (TN, D).
    mu_sel = mus[0:1, :]
    inv_sel = invs[0:1, :]
    for g in range(1, num_groups):
        m = attr == g                           # (TN, 1) -> broadcasts over lanes
        mu_sel = jnp.where(m, mus[g:g + 1, :], mu_sel)
        inv_sel = jnp.where(m, invs[g:g + 1, :], inv_sel)

    out_ref[...] = ((x - mu_sel) * inv_sel).astype(out_ref.dtype)


def _agn_onehot_kernel(attr_ref, x_ref, mus_ref, inv_ref, out_ref, *, num_groups):
    """Large-G path: gather via one-hot matmul on the (otherwise idle) MXU."""
    x = x_ref[...].astype(jnp.float32)          # (TN, D)
    attr = attr_ref[...]                        # (TN, 1)
    gids = lax.broadcasted_iota(jnp.int32, (attr.shape[0], num_groups), 1)
    onehot = (attr == gids).astype(jnp.float32)                    # (TN, G)
    mu_sel = jnp.dot(onehot, mus_ref[...], preferred_element_type=jnp.float32)
    inv_sel = jnp.dot(onehot, inv_ref[...], preferred_element_type=jnp.float32)
    out_ref[...] = ((x - mu_sel) * inv_sel).astype(out_ref.dtype)


# ----------------------------------------------------------------------------
# Wrapper
# ----------------------------------------------------------------------------
def _round_up8(v):
    return -(-int(v) // 8) * 8


def attribute_grouped_normalizer(x, attr, mus=None, sigmas=None, *,
                                 num_attr=None, eps=EPS, block_rows=None,
                                 vmem_budget_bytes=8 << 20, donate_x=False):
    """x: (N, D); attr: (N,) int group ids; mus/sigmas: (G, D) per-group stats.

    Returns an array with the same shape AND dtype as x.
    """
    N, D = x.shape
    if num_attr is None:
        if mus is None:
            raise ValueError("num_attr must be provided when mus is None")
        num_attr = int(jnp.asarray(mus).shape[0])
    num_attr = int(num_attr)

    # Module defaults: mus -> zeros, sigmas -> ones (built at first forward).
    if mus is None:
        mus = jnp.zeros((num_attr, D), jnp.float32)
    if sigmas is None:
        sigmas = jnp.ones((num_attr, D), jnp.float32)

    mus_f32 = jnp.asarray(mus, jnp.float32).reshape(num_attr, D)
    # Hoisted per-group math: in-kernel divide becomes a multiply.
    inv_sig = 1.0 / (jnp.asarray(sigmas, jnp.float32).reshape(num_attr, D) + eps)
    attr2d = jnp.asarray(attr, jnp.int32).reshape(N, 1)

    # ---- tile sizing from VMEM budget (double-buffered x, out, attr; 2x params)
    xb = x.dtype.itemsize
    per_row = 4 * D * xb + 2 * 128 * 4          # 2*x + 2*out + 2*attr(lane-padded)
    param_bytes = 2 * 2 * num_attr * D * 4      # mus + inv_sigma, double-buffered
    tn = (int(vmem_budget_bytes) - param_bytes) // per_row
    tn = max(8, (int(tn) // 8) * 8)
    if block_rows is not None:
        tn = max(8, min(tn, (int(block_rows) // 8) * 8))
    if N >= 16:
        # v7x: keep >= 2 row tiles so dimension_semantics=("parallel",) feeds
        # both TensorCores; no effect on v5e/v6e (single TC).
        tn = min(tn, _round_up8((N + 1) // 2))
    tn = min(tn, _round_up8(N))
    grid = (pl.cdiv(N, tn),)

    vmem_limit = int(min(64 << 20,
                         max(8 << 20, 2 * (param_bytes + tn * per_row))))

    if num_attr <= 4:
        kernel = functools.partial(_agn_select_kernel, num_groups=num_attr)
    else:
        kernel = functools.partial(_agn_onehot_kernel, num_groups=num_attr)

    return pl.pallas_call(
        kernel,
        out_shape=jax.ShapeDtypeStruct((N, D), x.dtype),
        grid=grid,
        in_specs=[
            pl.BlockSpec((tn, 1), lambda i: (i, 0)),            # attr (row tile)
            pl.BlockSpec((tn, D), lambda i: (i, 0)),            # x    (row tile)
            pl.BlockSpec((num_attr, D), lambda i: (0, 0)),      # mus  (constant)
            pl.BlockSpec((num_attr, D), lambda i: (0, 0)),      # 1/(sigma+eps)
        ],
        out_specs=pl.BlockSpec((tn, D), lambda i: (i, 0)),
        compiler_params=pltpu.CompilerParams(
            dimension_semantics=("parallel",),
            vmem_limit_bytes=vmem_limit,
        ),
        input_output_aliases=({1: 0} if donate_x else {}),
    )(attr2d, x, mus_f32, inv_sig)


# ----------------------------------------------------------------------------
# Demo / self-test
# ----------------------------------------------------------------------------
if __name__ == "__main__":
    key = jax.random.PRNGKey(0)
    k1, k2, k3, k4, k5, k6, k7, k8 = jax.random.split(key, 8)

    N, D = 128, 128

    # Case 1: f32, G=4 (compare+select path), explicit stats, multi-tile grid.
    num_attr = 4
    x = jax.random.normal(k1, (N, D), dtype=jnp.float32)
    attr = jax.random.randint(k2, (N,), 0, num_attr, dtype=jnp.int32)
    mus = jax.random.normal(k3, (num_attr, D), dtype=jnp.float32)
    sigmas = jax.random.uniform(k4, (num_attr, D), minval=0.5, maxval=2.0,
                                dtype=jnp.float32)
    out = jax.block_until_ready(attribute_grouped_normalizer(x, attr, mus, sigmas))
    ref = (x - mus[attr]) / (sigmas[attr] + EPS)
    assert out.shape == x.shape and out.dtype == x.dtype
    assert jnp.allclose(out, ref, rtol=1e-5, atol=1e-5), float(
        jnp.max(jnp.abs(out - ref)))

    # Case 2: module defaults (mus=None -> zeros, sigmas=None -> ones).
    out2 = jax.block_until_ready(
        attribute_grouped_normalizer(x, attr, num_attr=num_attr))
    ref2 = x / (1.0 + EPS)
    assert jnp.allclose(out2, ref2, rtol=1e-5, atol=1e-5)

    # Case 3: bf16 input (dtype-preserving I/O), G=8 -> one-hot MXU path.
    num_attr3 = 8
    x3 = jax.random.normal(k5, (N, D), dtype=jnp.bfloat16)
    attr3 = jax.random.randint(k6, (N,), 0, num_attr3, dtype=jnp.int32)
    mus3 = jax.random.normal(k7, (num_attr3, D), dtype=jnp.float32)
    sigmas3 = jax.random.uniform(k8, (num_attr3, D), minval=0.5, maxval=2.0,
                                 dtype=jnp.float32)
    out3 = jax.block_until_ready(
        attribute_grouped_normalizer(x3, attr3, mus3, sigmas3))
    assert out3.dtype == jnp.bfloat16
    ref3 = ((x3.astype(jnp.float32) - mus3[attr3])
            * (1.0 / (sigmas3[attr3] + EPS))).astype(jnp.bfloat16)
    assert jnp.allclose(out3.astype(jnp.float32), ref3.astype(jnp.float32),
                        rtol=2e-2, atol=2e-2)

    print("KERNEL_OK")
</pallas_src>

<mosaic_0001>
module attributes {stable_mosaic.version = 11 : i64} {
  func.func @_agn_select_kernel(%arg0: i32, %arg1: memref<64x1xi32, #tpu.memory_space<vmem>>, %arg2: memref<64x128xf32, #tpu.memory_space<vmem>>, %arg3: memref<4x128xf32, #tpu.memory_space<vmem>>, %arg4: memref<4x128xf32, #tpu.memory_space<vmem>>, %arg5: memref<64x128xf32, #tpu.memory_space<vmem>>) attributes {dimension_semantics = [#tpu.dimension_semantics<parallel>], iteration_bounds = array<i64: 2>, scalar_prefetch = 0 : i64, scratch_operands = 0 : i64, tpu.core_type = #tpu.core_type<tc>, window_params = [{transform_indices = @transform_0, window_bounds = array<i64: 64, 1>}, {transform_indices = @transform_1, window_bounds = array<i64: 64, 128>}, {pipeline_mode = #tpu.pipeline_mode<synchronous>, transform_indices = @transform_2, window_bounds = array<i64: 4, 128>}, {pipeline_mode = #tpu.pipeline_mode<synchronous>, transform_indices = @transform_3, window_bounds = array<i64: 4, 128>}, {transform_indices = @transform_4, window_bounds = array<i64: 64, 128>}]} {
    %c0 = arith.constant 0 : index
    %c0_0 = arith.constant 0 : index
    %0 = vector.load %arg2[%c0, %c0_0] : memref<64x128xf32, #tpu.memory_space<vmem>>, vector<64x128xf32>
    %c0_1 = arith.constant 0 : index
    %c0_2 = arith.constant 0 : index
    %1 = vector.load %arg1[%c0_1, %c0_2] : memref<64x1xi32, #tpu.memory_space<vmem>>, vector<64x1xi32>
    %c0_3 = arith.constant 0 : index
    %c0_4 = arith.constant 0 : index
    %2 = vector.load %arg3[%c0_3, %c0_4] : memref<4x128xf32, #tpu.memory_space<vmem>>, vector<4x128xf32>
    %c0_5 = arith.constant 0 : index
    %c0_6 = arith.constant 0 : index
    %3 = vector.load %arg4[%c0_5, %c0_6] : memref<4x128xf32, #tpu.memory_space<vmem>>, vector<4x128xf32>
    %4 = vector.extract_strided_slice %2 {offsets = [0, 0], sizes = [1, 128], strides = [1, 1]} : vector<4x128xf32> to vector<1x128xf32>
    %5 = vector.extract_strided_slice %3 {offsets = [0, 0], sizes = [1, 128], strides = [1, 1]} : vector<4x128xf32> to vector<1x128xf32>
    %c1_i32 = arith.constant 1 : i32
    %6 = vector.broadcast %c1_i32 : i32 to vector<64x1xi32>
    %7 = arith.cmpi eq, %1, %6 : vector<64x1xi32>
    %8 = vector.extract_strided_slice %2 {offsets = [1, 0], sizes = [1, 128], strides = [1, 1]} : vector<4x128xf32> to vector<1x128xf32>
    %9 = vector.shape_cast %7 : vector<64x1xi1> to vector<64x1xi1>
    %10 = vector.broadcast %9 : vector<64x1xi1> to vector<64x128xi1>
    %11 = vector.shape_cast %8 : vector<1x128xf32> to vector<1x128xf32>
    %12 = vector.broadcast %11 : vector<1x128xf32> to vector<64x128xf32>
    %13 = vector.shape_cast %4 : vector<1x128xf32> to vector<1x128xf32>
    %14 = vector.broadcast %13 : vector<1x128xf32> to vector<64x128xf32>
    %15 = arith.select %10, %12, %14 : vector<64x128xi1>, vector<64x128xf32>
    %16 = vector.extract_strided_slice %3 {offsets = [1, 0], sizes = [1, 128], strides = [1, 1]} : vector<4x128xf32> to vector<1x128xf32>
    %17 = vector.shape_cast %7 : vector<64x1xi1> to vector<64x1xi1>
    %18 = vector.broadcast %17 : vector<64x1xi1> to vector<64x128xi1>
    %19 = vector.shape_cast %16 : vector<1x128xf32> to vector<1x128xf32>
    %20 = vector.broadcast %19 : vector<1x128xf32> to vector<64x128xf32>
    %21 = vector.shape_cast %5 : vector<1x128xf32> to vector<1x128xf32>
    %22 = vector.broadcast %21 : vector<1x128xf32> to vector<64x128xf32>
    %23 = arith.select %18, %20, %22 : vector<64x128xi1>, vector<64x128xf32>
    %c2_i32 = arith.constant 2 : i32
    %24 = vector.broadcast %c2_i32 : i32 to vector<64x1xi32>
    %25 = arith.cmpi eq, %1, %24 : vector<64x1xi32>
    %26 = vector.extract_strided_slice %2 {offsets = [2, 0], sizes = [1, 128], strides = [1, 1]} : vector<4x128xf32> to vector<1x128xf32>
    %27 = vector.shape_cast %25 : vector<64x1xi1> to vector<64x1xi1>
    %28 = vector.broadcast %27 : vector<64x1xi1> to vector<64x128xi1>
    %29 = vector.shape_cast %26 : vector<1x128xf32> to vector<1x128xf32>
    %30 = vector.broadcast %29 : vector<1x128xf32> to vector<64x128xf32>
    %31 = arith.select %28, %30, %15 : vector<64x128xi1>, vector<64x128xf32>
    %32 = vector.extract_strided_slice %3 {offsets = [2, 0], sizes = [1, 128], strides = [1, 1]} : vector<4x128xf32> to vector<1x128xf32>
    %33 = vector.shape_cast %25 : vector<64x1xi1> to vector<64x1xi1>
    %34 = vector.broadcast %33 : vector<64x1xi1> to vector<64x128xi1>
    %35 = vector.shape_cast %32 : vector<1x128xf32> to vector<1x128xf32>
    %36 = vector.broadcast %35 : vector<1x128xf32> to vector<64x128xf32>
    %37 = arith.select %34, %36, %23 : vector<64x128xi1>, vector<64x128xf32>
    %c3_i32 = arith.constant 3 : i32
    %38 = vector.broadcast %c3_i32 : i32 to vector<64x1xi32>
    %39 = arith.cmpi eq, %1, %38 : vector<64x1xi32>
    %40 = vector.extract_strided_slice %2 {offsets = [3, 0], sizes = [1, 128], strides = [1, 1]} : vector<4x128xf32> to vector<1x128xf32>
    %41 = vector.shape_cast %39 : vector<64x1xi1> to vector<64x1xi1>
    %42 = vector.broadcast %41 : vector<64x1xi1> to vector<64x128xi1>
    %43 = vector.shape_cast %40 : vector<1x128xf32> to vector<1x128xf32>
    %44 = vector.broadcast %43 : vector<1x128xf32> to vector<64x128xf32>
    %45 = arith.select %42, %44, %31 : vector<64x128xi1>, vector<64x128xf32>
    %46 = vector.extract_strided_slice %3 {offsets = [3, 0], sizes = [1, 128], strides = [1, 1]} : vector<4x128xf32> to vector<1x128xf32>
    %47 = vector.shape_cast %39 : vector<64x1xi1> to vector<64x1xi1>
    %48 = vector.broadcast %47 : vector<64x1xi1> to vector<64x128xi1>
    %49 = vector.shape_cast %46 : vector<1x128xf32> to vector<1x128xf32>
    %50 = vector.broadcast %49 : vector<1x128xf32> to vector<64x128xf32>
    %51 = arith.select %48, %50, %37 : vector<64x128xi1>, vector<64x128xf32>
    %52 = arith.subf %0, %45 : vector<64x128xf32>
    %53 = arith.mulf %52, %51 : vector<64x128xf32>
    %c0_7 = arith.constant 0 : index
    %c0_8 = arith.constant 0 : index
    %54 = vector.load %arg5[%c0_7, %c0_8] : memref<64x128xf32, #tpu.memory_space<vmem>>, vector<64x128xf32>
    tpu.vector_store %arg5[%c0_7, %c0_8], %53 {strides = array<i32>} : memref<64x128xf32, #tpu.memory_space<vmem>>, vector<64x128xf32>,
    return
  }
  func.func @transform_0(%arg0: i32) -> (i32, i32) {
    %c0_i32 = arith.constant 0 : i32
    %c0_i32_0 = arith.constant 0 : i32
    return %arg0, %c0_i32 : i32, i32
  }
  func.func @transform_1(%arg0: i32) -> (i32, i32) {
    %c0_i32 = arith.constant 0 : i32
    %c0_i32_0 = arith.constant 0 : i32
    return %arg0, %c0_i32 : i32, i32
  }
  func.func @transform_2(%arg0: i32) -> (i32, i32) {
    %c0_i32 = arith.constant 0 : i32
    %c0_i32_0 = arith.constant 0 : i32
    %c0_i32_1 = arith.constant 0 : i32
    return %c0_i32, %c0_i32_0 : i32, i32
  }
  func.func @transform_3(%arg0: i32) -> (i32, i32) {
    %c0_i32 = arith.constant 0 : i32
    %c0_i32_0 = arith.constant 0 : i32
    %c0_i32_1 = arith.constant 0 : i32
    return %c0_i32, %c0_i32_0 : i32, i32
  }
  func.func @transform_4(%arg0: i32) -> (i32, i32) {
    %c0_i32 = arith.constant 0 : i32
    %c0_i32_0 = arith.constant 0 : i32
    return %arg0, %c0_i32 : i32, i32
  }
}

</mosaic_0001>

<llo_original>
// kernel: tpu_custom_call.1
$region0: #{tpu_custom_call.1}
  #allocation0 [shape = 'u32[]', space=smem, size = 0x4, offset = 0x4, fixed_abs, tag = 'smem constant byte address 0x4 - core index']
  #allocation1 [shape = 'u32[144,128]{1,0:T(1,128)}', space=vmem, size = 0x12000, scoped, tag = 'internal scratch']
  %s0 = inlined_call_operand.vmem [shape: s32[128,1], index: 0, kind: input, shape index: {}]
  %s1 = inlined_call_operand.vmem [shape: f32[128,128], index: 1, kind: input, shape index: {}]
  %s2 = inlined_call_operand.vmem [shape: f32[4,128], index: 2, kind: input, shape index: {}]
  %s3 = inlined_call_operand.vmem [shape: f32[4,128], index: 3, kind: input, shape index: {}]
  %s4 = inlined_call_operand.hbm [shape: f32[128,128], index: 4, kind: output, shape index: {}]
  %s5 = sld [smem:[#allocation0]]
  $region49: #{tpu_custom_call.1} parent=0
    _
  %s7 = ssub.s32 1, %s5
  %s8 = scalar_select 0, %s7, %s5
  $region1: #{tpu_custom_call.1} parent=0
    #allocation2 [shape = 'u8[65536]{0}', space=vmem, size = 0x10000, scoped, tag = 'output window, operand 0']
    #allocation3 [shape = 's32[2]{0}', space=sflag, size = 0x8, scoped, tag = 'scoped memory for tpu_custom_call.1']
    %9 = vsyncpa [#allocation3], 0
    %s10 = scalar_lea.sflag [#allocation3], 1
    %11 = vsyncpa %s10, 0
    loop: start=0, step=1, limit=4
    $region2: #{tpu_custom_call.1} parent=1 // loop_pre_header
      _
    $region3: #{tpu_custom_call.1} parent=1 // loop_header
      %s13 = sphi 0, %s17
      %p14 = scmp.ge.s32.totalorder %s13, 4
      %s23 = sphi 0, %s25
      %s26 = sphi 0, %s23
      %s27 = sphi 0, %s26
      %s43 = sphi 0, %s27
      %s49 = sphi 0, %s51
      %s52 = sphi 0, %s49
      %s53 = sphi 0, %s52
      %s69 = sphi 0, %s53
      %s73 = sphi 0, %s73
      %s75 = sphi 0, %s73
      %s76 = sphi 0, %s75
      %s90 = sphi 0, %s76
      %s94 = sphi 0, %s94
      %s96 = sphi 0, %s94
      %s97 = sphi 0, %s96
      %s111 = sphi 0, %s97
      %s117 = sphi 0, %s119
      %s120 = sphi 0, %s117
      %s121 = sphi 0, %s120
      %s137 = sphi 0, %s121
    $region4: #{tpu_custom_call.1} parent=1 // loop_header_branch
      %16 = sbr.rel (%p14) target = $region8
    $region5: #{tpu_custom_call.1} parent=1 // loop_body
      %s18 = ssub.s32 %s13, 1
      %s19 = ssub.s32 %s13, 2
      %s20 = sadd.s32 %s13, 1
      %s21 = ssub.s32 %s13, %s20
      %p22 = scmp.eq.s32.totalorder %s21, 0
      %s24 = sadd.s32 %s23, 1
      %s25 = scalar_select %p22, %s23, %s24
      %p28 = pneg %p22
      %p29 = scmp.eq.s32.totalorder %s13, 1
      %p30 = por %p28, %p29
      %p31 = scmp.ne.s32.totalorder %s23, %s26
      %p32 = scmp.eq.s32.totalorder %s13, 0
      %p33 = por %p31, %p32
      %p34 = scmp.ne.s32.totalorder %s23, %s26
      %p35 = scmp.eq.s32.totalorder %s18, 1
      %p36 = por %p34, %p35
      %p37 = scmp.ne.s32.totalorder %s26, %s27
      %p38 = scmp.eq.s32.totalorder %s18, 0
      %p39 = por %p37, %p38
      %p40 = scmp.ne.s32.totalorder %s26, %s27
      %p41 = scmp.eq.s32.totalorder %s19, 1
      %p42 = por %p40, %p41
      %p44 = scmp.ne.s32.totalorder %s27, %s43
      %p45 = scmp.eq.s32.totalorder %s19, 0
      %p46 = por %p44, %p45
      %s47 = ssub.s32 %s13, %s20
      %p48 = scmp.eq.s32.totalorder %s47, 0
      %s50 = sadd.s32 %s49, 1
      %s51 = scalar_select %p48, %s49, %s50
      %p54 = pneg %p48
      %p55 = scmp.eq.s32.totalorder %s13, 1
      %p56 = por %p54, %p55
      %p57 = scmp.ne.s32.totalorder %s49, %s52
      %p58 = scmp.eq.s32.totalorder %s13, 0
      %p59 = por %p57, %p58
      %p60 = scmp.ne.s32.totalorder %s49, %s52
      %p61 = scmp.eq.s32.totalorder %s18, 1
      %p62 = por %p60, %p61
      %p63 = scmp.ne.s32.totalorder %s52, %s53
      %p64 = scmp.eq.s32.totalorder %s18, 0
      %p65 = por %p63, %p64
      %p66 = scmp.ne.s32.totalorder %s52, %s53
      %p67 = scmp.eq.s32.totalorder %s19, 1
      %p68 = por %p66, %p67
      %p70 = scmp.ne.s32.totalorder %s53, %s69
      %p71 = scmp.eq.s32.totalorder %s19, 0
      %p72 = por %p70, %p71
      %s74 = sadd.s32 %s73, 1
      %p77 = scmp.eq.s32.totalorder %s13, 1
      %p78 = scmp.ne.s32.totalorder %s73, %s75
      %p79 = scmp.eq.s32.totalorder %s13, 0
      %p80 = por %p78, %p79
      %p81 = scmp.ne.s32.totalorder %s73, %s75
      %p82 = scmp.eq.s32.totalorder %s18, 1
      %p83 = por %p81, %p82
      %p84 = scmp.ne.s32.totalorder %s75, %s76
      %p85 = scmp.eq.s32.totalorder %s18, 0
      %p86 = por %p84, %p85
      %p87 = scmp.ne.s32.totalorder %s75, %s76
      %p88 = scmp.eq.s32.totalorder %s19, 1
      %p89 = por %p87, %p88
      %p91 = scmp.ne.s32.totalorder %s76, %s90
      %p92 = scmp.eq.s32.totalorder %s19, 0
      %p93 = por %p91, %p92
      %s95 = sadd.s32 %s94, 1
      %p98 = scmp.eq.s32.totalorder %s13, 1
      %p99 = scmp.ne.s32.totalorder %s94, %s96
      %p100 = scmp.eq.s32.totalorder %s13, 0
      %p101 = por %p99, %p100
      %p102 = scmp.ne.s32.totalorder %s94, %s96
      %p103 = scmp.eq.s32.totalorder %s18, 1
      %p104 = por %p102, %p103
      %p105 = scmp.ne.s32.totalorder %s96, %s97
      %p106 = scmp.eq.s32.totalorder %s18, 0
      %p107 = por %p105, %p106
      %p108 = scmp.ne.s32.totalorder %s96, %s97
      %p109 = scmp.eq.s32.totalorder %s19, 1
      %p110 = por %p108, %p109
      %p112 = scmp.ne.s32.totalorder %s97, %s111
      %p113 = scmp.eq.s32.totalorder %s19, 0
      %p114 = por %p112, %p113
      %s115 = ssub.s32 %s13, %s20
      %p116 = scmp.eq.s32.totalorder %s115, 0
      %s118 = sadd.s32 %s117, 1
      %s119 = scalar_select %p116, %s117, %s118
      %p122 = pneg %p116
      %p123 = scmp.eq.s32.totalorder %s13, 1
      %p124 = por %p122, %p123
      %p125 = scmp.ne.s32.totalorder %s117, %s120
      %p126 = scmp.eq.s32.totalorder %s13, 0
      %p127 = por %p125, %p126
      %p128 = scmp.ne.s32.totalorder %s117, %s120
      %p129 = scmp.eq.s32.totalorder %s18, 1
      %p130 = por %p128, %p129
      %p131 = scmp.ne.s32.totalorder %s120, %s121
      %p132 = scmp.eq.s32.totalorder %s18, 0
      %p133 = por %p131, %p132
      %p134 = scmp.ne.s32.totalorder %s120, %s121
      %p135 = scmp.eq.s32.totalorder %s19, 1
      %p136 = por %p134, %p135
      %p138 = scmp.ne.s32.totalorder %s121, %s137
      %p139 = scmp.eq.s32.totalorder %s19, 0
      %p140 = por %p138, %p139
      %p141 = scmp.le.s32.totalorder 1, %s13
      %p142 = scmp.lt.s32.totalorder %s13, 3
      %p143 = pnand %p141, %p142
      %p144 = pneg %p143
      // Predicated region
      $region9: #{tpu_custom_call.1} parent=5 // pred_check
        _
      $region10: #{tpu_custom_call.1} parent=5 // pred_check_branch
        %146 = sbr.rel (%p143) target = $region12
      $region11: #{tpu_custom_call.1} parent=5 // pred_region
        %s147 = ssub.s32 %s13, 1
        // Predicated region
        $region13: #{tpu_custom_call.1} parent=11 // pred_check
          %p148 = pneg %p86
        $region14: #{tpu_custom_call.1} parent=11 // pred_check_branch
          %150 = sbr.rel (%p148) target = $region16
        $region15: #{tpu_custom_call.1} parent=11 // pred_region
          _
        $region16: #{tpu_custom_call.1} parent=11 // pred_fallthru
          _
        // Predicated region
        $region17: #{tpu_custom_call.1} parent=11 // pred_check
          %p151 = pneg %p107
        $region18: #{tpu_custom_call.1} parent=11 // pred_check_branch
          %153 = sbr.rel (%p151) target = $region20
        $region19: #{tpu_custom_call.1} parent=11 // pred_region
          _
        $region20: #{tpu_custom_call.1} parent=11 // pred_fallthru
          _
      $region12: #{tpu_custom_call.1} parent=5 // pred_fallthru
        _
      %p154 = scmp.lt.s32.totalorder %s13, 2
      // Predicated region
      $region21: #{tpu_custom_call.1} parent=5 // pred_check
        %p155 = pneg %p154
      $region22: #{tpu_custom_call.1} parent=5 // pred_check_branch
        %157 = sbr.rel (%p155) target = $region24
      $region23: #{tpu_custom_call.1} parent=5 // pred_region
        // Predicated region
        $region25: #{tpu_custom_call.1} parent=23 // pred_check
          %p158 = pneg %p33
        $region26: #{tpu_custom_call.1} parent=23 // pred_check_branch
          %160 = sbr.rel (%p158) target = $region28
        $region27: #{tpu_custom_call.1} parent=23 // pred_region
          %s161 = smul.u32 8, %s13
          %p162 = scmp.lt.s32.totalorder %s161, 15
          %s163 = scalar_select %p162, %s161, 15
          %s164 = smul.addr %s163, 8
          %s165 = scalar_lea.vmem %s0, %s164
          %s166 = smul.u32 8, %s13
        $region28: #{tpu_custom_call.1} parent=23 // pred_fallthru
          _
        // Predicated region
        $region29: #{tpu_custom_call.1} parent=23 // pred_check
          %p167 = pneg %p59
        $region30: #{tpu_custom_call.1} parent=23 // pred_check_branch
          %169 = sbr.rel (%p167) target = $region32
        $region31: #{tpu_custom_call.1} parent=23 // pred_region
          %s170 = smul.u32 8, %s13
          %p171 = scmp.lt.s32.totalorder %s170, 15
          %s172 = scalar_select %p171, %s170, 15
          %s173 = smul.addr %s172, 8
          %s174 = scalar_lea.vmem %s1, %s173
          %s175 = smul.u32 8, %s13
        $region32: #{tpu_custom_call.1} parent=23 // pred_fallthru
          _
      $region24: #{tpu_custom_call.1} parent=5 // pred_fallthru
        _
      %p176 = scmp.le.s32.totalorder 1, %s13
      %p177 = scmp.lt.s32.totalorder %s13, 3
      %p178 = pnand %p176, %p177
      %p179 = pneg %p178
      // Predicated region
      $region33: #{tpu_custom_call.1} parent=5 // pred_check
        _
      $region34: #{tpu_custom_call.1} parent=5 // pred_check_branch
        %181 = sbr.rel (%p178) target = $region36
      $region35: #{tpu_custom_call.1} parent=5 // pred_region
        %s182 = ssub.s32 %s13, 1
        %s183 = smul.u32 8, %s18
        %p184 = scmp.lt.s32.totalorder %s183, 15
        %s185 = scalar_select %p184, %s183, 15
        %s186 = smul.addr %s185, 8
        %s187 = scalar_lea.vmem %s0, %s186
        %p188 = pneg %p39
        %p189 = pneg %p36
        %s190 = smul.u32 8, %s18
        %p191 = scmp.lt.s32.totalorder %s190, 15
        %s192 = scalar_select %p191, %s190, 15
        %s193 = smul.addr %s192, 8
        %s194 = scalar_lea.vmem %s1, %s193
        %p195 = pneg %p65
        %p196 = pneg %p62
        %p197 = pneg %p86
        %p198 = pneg %p83
        %p199 = pneg %p107
        %p200 = pneg %p104
        %p201 = pneg %p133
        %p202 = pneg %p130
        %s203 = sand.u32 %s120, 1
        %s204 = scalar_lea.sflag [#allocation3], %s203
        %s205 = sand.u32 %s120, 1
        %s206 = smul.addr %s205, 64
        %s207 = scalar_lea.vmem [#allocation2], %s206
        %s208 = smul.u32 8, %s18
        %p209 = scmp.lt.s32.totalorder %s208, 15
        %s210 = scalar_select %p209, %s208, 15
        %s211 = smul.addr %s210, 8
        %s212 = scalar_lea.vmem %s0, %s211
        %s213 = smul.u32 8, %s18
        %s214 = smul.u32 8, %s18
        %p215 = scmp.lt.s32.totalorder %s214, 15
        %s216 = scalar_select %p215, %s214, 15
        %s217 = smul.addr %s216, 8
        %s218 = scalar_lea.vmem %s1, %s217
        %s219 = smul.u32 8, %s18
        %s220 = smul.u32 8, %s18
        %v221 = vld [vmem:[%s218] sm:$0xff]
        %v222 = vld [vmem:[%s218 + $0x8] sm:$0xff]
        %v223 = vld [vmem:[%s218 + $0x10] sm:$0xff]
        %v224 = vld [vmem:[%s218 + $0x18] sm:$0xff]
        %v225 = vld [vmem:[%s218 + $0x20] sm:$0xff]
        %v226 = vld [vmem:[%s218 + $0x28] sm:$0xff]
        %v227 = vld [vmem:[%s218 + $0x30] sm:$0xff]
        %v228 = vld [vmem:[%s218 + $0x38] sm:$0xff]
        %v229 = vld [vmem:[%s212] sm:$0xff]
        %v230 = vld [vmem:[%s212 + $0x8] sm:$0xff]
        %v231 = vld [vmem:[%s212 + $0x10] sm:$0xff]
        %v232 = vld [vmem:[%s212 + $0x18] sm:$0xff]
        %v233 = vld [vmem:[%s212 + $0x20] sm:$0xff]
        %v234 = vld [vmem:[%s212 + $0x28] sm:$0xff]
        %v235 = vld [vmem:[%s212 + $0x30] sm:$0xff]
        %v236 = vld [vmem:[%s212 + $0x38] sm:$0xff]
        %v237 = vld [vmem:[%s2] sm:$0xf]
        %v238 = vld [vmem:[%s3] sm:$0xf]
        %vm239 = vcmp.eq.s32.totalorder %v229, 1
        %vm240 = vcmp.eq.s32.totalorder %v230, 1
        %vm241 = vcmp.eq.s32.totalorder %v231, 1
        %vm242 = vcmp.eq.s32.totalorder %v232, 1
        %vm243 = vcmp.eq.s32.totalorder %v233, 1
        %vm244 = vcmp.eq.s32.totalorder %v234, 1
        %vm245 = vcmp.eq.s32.totalorder %v235, 1
        %vm246 = vcmp.eq.s32.totalorder %v236, 1
        %v247 = vsel %vm239, 1, 0
        %v248 = vsel %vm240, 1, 0
        %v249 = vsel %vm241, 1, 0
        %v250 = vsel %vm242, 1, 0
        %v251 = vsel %vm243, 1, 0
        %v252 = vsel %vm244, 1, 0
        %v253 = vsel %vm245, 1, 0
        %v254 = vsel %vm246, 1, 0
        %255 = vset.pattern.permute.xlu0 0
        %256 = vperm.xlu0 %255, %v247
        %v257 = vpop.permute.xlu0 %256
        %258 = vset.pattern.permute.xlu0 0
        %259 = vperm.xlu0 %258, %v248
        %v260 = vpop.permute.xlu0 %259
        %261 = vset.pattern.permute.xlu0 0
        %262 = vperm.xlu0 %261, %v249
        %v263 = vpop.permute.xlu0 %262
        %264 = vset.pattern.permute.xlu0 0
        %265 = vperm.xlu0 %264, %v250
        %v266 = vpop.permute.xlu0 %265
        %267 = vset.pattern.permute.xlu0 0
        %268 = vperm.xlu0 %267, %v251
        %v269 = vpop.permute.xlu0 %268
        %270 = vset.pattern.permute.xlu0 0
        %271 = vperm.xlu0 %270, %v252
        %v272 = vpop.permute.xlu0 %271
        %273 = vset.pattern.permute.xlu0 0
        %274 = vperm.xlu0 %273, %v253
        %v275 = vpop.permute.xlu0 %274
        %276 = vset.pattern.permute.xlu0 0
        %277 = vperm.xlu0 %276, %v254
        %v278 = vpop.permute.xlu0 %277
        %vm279 = vcmp.eq.s32.totalorder %v257, 1
        %vm280 = vcmp.eq.s32.totalorder %v260, 1
        %vm281 = vcmp.eq.s32.totalorder %v263, 1
        %vm282 = vcmp.eq.s32.totalorder %v266, 1
        %vm283 = vcmp.eq.s32.totalorder %v269, 1
        %vm284 = vcmp.eq.s32.totalorder %v272, 1
        %vm285 = vcmp.eq.s32.totalorder %v275, 1
        %vm286 = vcmp.eq.s32.totalorder %v278, 1
        %v287 = vlaneseq
        %v288 = vshrl.u32 %v287, 7
        %v289 = vsub.s32 1, %v288
        %v290 = vrot.slane %v237, %v289
        %v291 = vlaneseq
        %v292 = vshrl.u32 %v291, 7
        %v293 = vsub.s32 0, %v292
        %v294 = vrot.slane %v237, %v293
        %v295 = vsel %vm279, %v290, %v294
        %v296 = vsel %vm280, %v290, %v294
        %v297 = vsel %vm281, %v290, %v294
        %v298 = vsel %vm282, %v290, %v294
        %v299 = vsel %vm283, %v290, %v294
        %v300 = vsel %vm284, %v290, %v294
        %v301 = vsel %vm285, %v290, %v294
        %v302 = vsel %vm286, %v290, %v294
        %v303 = vlaneseq
        %v304 = vshrl.u32 %v303, 7
        %v305 = vsub.s32 1, %v304
        %v306 = vrot.slane %v238, %v305
        %v307 = vlaneseq
        %v308 = vshrl.u32 %v307, 7
        %v309 = vsub.s32 0, %v308
        %v310 = vrot.slane %v238, %v309
        %v311 = vsel %vm279, %v306, %v310
        %v312 = vsel %vm280, %v306, %v310
        %v313 = vsel %vm281, %v306, %v310
        %v314 = vsel %vm282, %v306, %v310
        %v315 = vsel %vm283, %v306, %v310
        %v316 = vsel %vm284, %v306, %v310
        %v317 = vsel %vm285, %v306, %v310
        %v318 = vsel %vm286, %v306, %v310
        %vm319 = vcmp.eq.s32.totalorder %v229, 2
        %vm320 = vcmp.eq.s32.totalorder %v230, 2
        %vm321 = vcmp.eq.s32.totalorder %v231, 2
        %vm322 = vcmp.eq.s32.totalorder %v232, 2
        %vm323 = vcmp.eq.s32.totalorder %v233, 2
        %vm324 = vcmp.eq.s32.totalorder %v234, 2
        %vm325 = vcmp.eq.s32.totalorder %v235, 2
        %vm326 = vcmp.eq.s32.totalorder %v236, 2
        %v327 = vsel %vm319, 1, 0
        %v328 = vsel %vm320, 1, 0
        %v329 = vsel %vm321, 1, 0
        %v330 = vsel %vm322, 1, 0
        %v331 = vsel %vm323, 1, 0
        %v332 = vsel %vm324, 1, 0
        %v333 = vsel %vm325, 1, 0
        %v334 = vsel %vm326, 1, 0
        %335 = vset.pattern.permute.xlu0 0
        %336 = vperm.xlu0 %335, %v327
        %v337 = vpop.permute.xlu0 %336
        %338 = vset.pattern.permute.xlu0 0
        %339 = vperm.xlu0 %338, %v328
        %v340 = vpop.permute.xlu0 %339
        %341 = vset.pattern.permute.xlu0 0
        %342 = vperm.xlu0 %341, %v329
        %v343 = vpop.permute.xlu0 %342
        %344 = vset.pattern.permute.xlu0 0
        %345 = vperm.xlu0 %344, %v330
        %v346 = vpop.permute.xlu0 %345
        %347 = vset.pattern.permute.xlu0 0
        %348 = vperm.xlu0 %347, %v331
        %v349 = vpop.permute.xlu0 %348
        %350 = vset.pattern.permute.xlu0 0
        %351 = vperm.xlu0 %350, %v332
        %v352 = vpop.permute.xlu0 %351
        %353 = vset.pattern.permute.xlu0 0
        %354 = vperm.xlu0 %353, %v333
        %v355 = vpop.permute.xlu0 %354
        %356 = vset.pattern.permute.xlu0 0
        %357 = vperm.xlu0 %356, %v334
        %v358 = vpop.permute.xlu0 %357
        %vm359 = vcmp.eq.s32.totalorder %v337, 1
        %vm360 = vcmp.eq.s32.totalorder %v340, 1
        %vm361 = vcmp.eq.s32.totalorder %v343, 1
        %vm362 = vcmp.eq.s32.totalorder %v346, 1
        %vm363 = vcmp.eq.s32.totalorder %v349, 1
        %vm364 = vcmp.eq.s32.totalorder %v352, 1
        %vm365 = vcmp.eq.s32.totalorder %v355, 1
        %vm366 = vcmp.eq.s32.totalorder %v358, 1
        %v367 = vlaneseq
        %v368 = vshrl.u32 %v367, 7
        %v369 = vsub.s32 2, %v368
        %v370 = vrot.slane %v237, %v369
        %v371 = vsel %vm359, %v370, %v295
        %v372 = vsel %vm360, %v370, %v296
        %v373 = vsel %vm361, %v370, %v297
        %v374 = vsel %vm362, %v370, %v298
        %v375 = vsel %vm363, %v370, %v299
        %v376 = vsel %vm364, %v370, %v300
        %v377 = vsel %vm365, %v370, %v301
        %v378 = vsel %vm366, %v370, %v302
        %v379 = vlaneseq
        %v380 = vshrl.u32 %v379, 7
        %v381 = vsub.s32 2, %v380
        %v382 = vrot.slane %v238, %v381
        %v383 = vsel %vm359, %v382, %v311
        %v384 = vsel %vm360, %v382, %v312
        %v385 = vsel %vm361, %v382, %v313
        %v386 = vsel %vm362, %v382, %v314
        %v387 = vsel %vm363, %v382, %v315
        %v388 = vsel %vm364, %v382, %v316
        %v389 = vsel %vm365, %v382, %v317
        %v390 = vsel %vm366, %v382, %v318
        %vm391 = vcmp.eq.s32.totalorder %v229, 3
        %vm392 = vcmp.eq.s32.totalorder %v230, 3
        %vm393 = vcmp.eq.s32.totalorder %v231, 3
        %vm394 = vcmp.eq.s32.totalorder %v232, 3
        %vm395 = vcmp.eq.s32.totalorder %v233, 3
        %vm396 = vcmp.eq.s32.totalorder %v234, 3
        %vm397 = vcmp.eq.s32.totalorder %v235, 3
        %vm398 = vcmp.eq.s32.totalorder %v236, 3
        %v399 = vsel %vm391, 1, 0
        %v400 = vsel %vm392, 1, 0
        %v401 = vsel %vm393, 1, 0
        %v402 = vsel %vm394, 1, 0
        %v403 = vsel %vm395, 1, 0
        %v404 = vsel %vm396, 1, 0
        %v405 = vsel %vm397, 1, 0
        %v406 = vsel %vm398, 1, 0
        %407 = vset.pattern.permute.xlu0 0
        %408 = vperm.xlu0 %407, %v399
        %v409 = vpop.permute.xlu0 %408
        %410 = vset.pattern.permute.xlu0 0
        %411 = vperm.xlu0 %410, %v400
        %v412 = vpop.permute.xlu0 %411
        %413 = vset.pattern.permute.xlu0 0
        %414 = vperm.xlu0 %413, %v401
        %v415 = vpop.permute.xlu0 %414
        %416 = vset.pattern.permute.xlu0 0
        %417 = vperm.xlu0 %416, %v402
        %v418 = vpop.permute.xlu0 %417
        %419 = vset.pattern.permute.xlu0 0
        %420 = vperm.xlu0 %419, %v403
        %v421 = vpop.permute.xlu0 %420
        %422 = vset.pattern.permute.xlu0 0
        %423 = vperm.xlu0 %422, %v404
        %v424 = vpop.permute.xlu0 %423
        %425 = vset.pattern.permute.xlu0 0
        %426 = vperm.xlu0 %425, %v405
        %v427 = vpop.permute.xlu0 %426
        %428 = vset.pattern.permute.xlu0 0
        %429 = vperm.xlu0 %428, %v406
        %v430 = vpop.permute.xlu0 %429
        %vm431 = vcmp.eq.s32.totalorder %v409, 1
        %vm432 = vcmp.eq.s32.totalorder %v412, 1
        %vm433 = vcmp.eq.s32.totalorder %v415, 1
        %vm434 = vcmp.eq.s32.totalorder %v418, 1
        %vm435 = vcmp.eq.s32.totalorder %v421, 1
        %vm436 = vcmp.eq.s32.totalorder %v424, 1
        %vm437 = vcmp.eq.s32.totalorder %v427, 1
        %vm438 = vcmp.eq.s32.totalorder %v430, 1
        %v439 = vlaneseq
        %v440 = vshrl.u32 %v439, 7
        %v441 = vsub.s32 3, %v440
        %v442 = vrot.slane %v237, %v441
        %v443 = vsel %vm431, %v442, %v371
        %v444 = vsel %vm432, %v442, %v372
        %v445 = vsel %vm433, %v442, %v373
        %v446 = vsel %vm434, %v442, %v374
        %v447 = vsel %vm435, %v442, %v375
        %v448 = vsel %vm436, %v442, %v376
        %v449 = vsel %vm437, %v442, %v377
        %v450 = vsel %vm438, %v442, %v378
        %v451 = vlaneseq
        %v452 = vshrl.u32 %v451, 7
        %v453 = vsub.s32 3, %v452
        %v454 = vrot.slane %v238, %v453
        %v455 = vsel %vm431, %v454, %v383
        %v456 = vsel %vm432, %v454, %v384
        %v457 = vsel %vm433, %v454, %v385
        %v458 = vsel %vm434, %v454, %v386
        %v459 = vsel %vm435, %v454, %v387
        %v460 = vsel %vm436, %v454, %v388
        %v461 = vsel %vm437, %v454, %v389
        %v462 = vsel %vm438, %v454, %v390
        %v463 = vsub.f32 %v221, %v443
        %v464 = vsub.f32 %v222, %v444
        %v465 = vsub.f32 %v223, %v445
        %v466 = vsub.f32 %v224, %v446
        %v467 = vsub.f32 %v225, %v447
        %v468 = vsub.f32 %v226, %v448
        %v469 = vsub.f32 %v227, %v449
        %v470 = vsub.f32 %v228, %v450
        %v471 = vmul.f32 %v463, %v455
        %v472 = vmul.f32 %v464, %v456
        %v473 = vmul.f32 %v465, %v457
        %v474 = vmul.f32 %v466, %v458
        %v475 = vmul.f32 %v467, %v459
        %v476 = vmul.f32 %v468, %v460
        %v477 = vmul.f32 %v469, %v461
        %v478 = vmul.f32 %v470, %v462
        %479 = vst [vmem:[%s207] sm:$0xff] %v471
        %480 = vst [vmem:[%s207 + $0x8] sm:$0xff] %v472
        %481 = vst [vmem:[%s207 + $0x10] sm:$0xff] %v473
        %482 = vst [vmem:[%s207 + $0x18] sm:$0xff] %v474
        %483 = vst [vmem:[%s207 + $0x20] sm:$0xff] %v475
        %484 = vst [vmem:[%s207 + $0x28] sm:$0xff] %v476
        %485 = vst [vmem:[%s207 + $0x30] sm:$0xff] %v477
        %486 = vst [vmem:[%s207 + $0x38] sm:$0xff] %v478
        %s487 = sand.u32 %s120, 1
        %s488 = scalar_lea.sflag [#allocation3], %s487
        %s489 = sand.u32 %s120, 1
        %s490 = smul.addr %s489, 64
        %s491 = scalar_lea.vmem [#allocation2], %s490
        // Predicated region
        $region37: #{tpu_custom_call.1} parent=35 // pred_check
          %p492 = pneg %p130
        $region38: #{tpu_custom_call.1} parent=35 // pred_check_branch
          %494 = sbr.rel (%p492) target = $region40
        $region39: #{tpu_custom_call.1} parent=35 // pred_region
          %s495 = smul.u32 8, %s18
          %s497 = ssub.s32 1024, 1024
          %498 = vsyncadd %s488, %s497
          %s499 = smul.addr %s495, 128
          %s500 = scalar_lea.hbm %s4, %s499
          %s501 = sshll.u32 %s491, 4
          %s502 = int_to_ptr.vmem [resolvable:$true] %s501
          %507 = dma.vmem_to_hbm [thread:$0]  %s502, 1024, %s500, %s488, 128, 128, 8
        $region40: #{tpu_custom_call.1} parent=35 // pred_fallthru
          _
      $region36: #{tpu_custom_call.1} parent=5 // pred_fallthru
        _
      %p508 = scmp.le.s32.totalorder 2, %s13
      // Predicated region
      $region41: #{tpu_custom_call.1} parent=5 // pred_check
        %p509 = pneg %p508
      $region42: #{tpu_custom_call.1} parent=5 // pred_check_branch
        %511 = sbr.rel (%p509) target = $region44
      $region43: #{tpu_custom_call.1} parent=5 // pred_region
        %s512 = ssub.s32 %s13, 2
        // Predicated region
        $region45: #{tpu_custom_call.1} parent=43 // pred_check
          %p513 = pneg %p136
        $region46: #{tpu_custom_call.1} parent=43 // pred_check_branch
          %515 = sbr.rel (%p513) target = $region48
        $region47: #{tpu_custom_call.1} parent=43 // pred_region
          %s516 = sand.u32 %s121, 1
          %s517 = scalar_lea.sflag [#allocation3], %s516
          %s518 = sand.u32 %s121, 1
          %s519 = smul.addr %s518, 64
          %s520 = scalar_lea.vmem [#allocation2], %s519
          %521 = dma.done %s517, 1024
        $region48: #{tpu_custom_call.1} parent=43 // pred_fallthru
          _
      $region44: #{tpu_custom_call.1} parent=5 // pred_fallthru
        _
    $region6: #{tpu_custom_call.1} parent=1 // loop_footer
      %s17 = sadd.s32 1, %s13
    $region7: #{tpu_custom_call.1} parent=1 // loop_footer_branch
      %12 = sbr.rel target = $region3
    $region8: #{tpu_custom_call.1} parent=1 // loop_exit
      _
    %522 = vsyncpa [#allocation3], 1
    %s523 = scalar_lea.sflag [#allocation3], 1
    %524 = vsyncpa %s523, 1

</llo_original>
